<compile_context>
chip_gen: v6e
topology: v6e:2x2x1
jax: 0.10.0
libtpu: 0.0.40
codegen_flags: <defaults>
</compile_context>

<pallas_src>
import functools

import jax
import jax.numpy as jnp
from jax import lax
from jax.experimental import pallas as pl
from jax.experimental.pallas import tpu as pltpu


# ----------------------------------------------------------------------------
# Fused conv3x3 ("same", stride 1, no bias) + BatchNorm2d kernel.
# ----------------------------------------------------------------------------
def conv_bn_kernel(x_ref, w2_ref, gb_ref, o_ref, rhs_ref, *,
                   N, Cpad, H, W, KH, KW, eps):
    # x_ref:   (Cpad, N*H*W)        channel-major input, spatial+batch on lanes
    # w2_ref:  (Cout, KH*KW*Cpad)   im2col weight, column order (kh, kw, cin_pad)
    # gb_ref:  (Cout, 2)            column 0 = gamma, column 1 = beta
    # o_ref:   (N, Cout, H*W)       NCHW output, spatial flattened onto lanes
    # rhs_ref: (KH*KW*Cpad, N*H*W)  VMEM scratch holding the im2col RHS
    HW = H * W
    NHW = N * HW
    ph, pw = (KH - 1) // 2, (KW - 1) // 2

    x = x_ref[...]                                      # (Cpad, NHW) f32

    # Per-column spatial coordinates, built in-kernel.  Float-only math (no
    # vector integer div); the +0.5 margins make every floor/compare robust.
    pos = lax.broadcasted_iota(jnp.int32, (1, NHW), 1).astype(jnp.float32)
    img = jnp.floor((pos + 0.5) * (1.0 / HW))           # image index
    hw = pos - img * HW                                 # 0..HW-1 within image
    row = jnp.floor((hw + 0.5) * (1.0 / W))             # 0..H-1
    col = hw - row * W                                  # 0..W-1

    # --- im2col RHS: KH*KW taps, each Cpad (8-aligned) rows, written straight
    # into the VMEM scratch.  Tap (kh, kw) reads flat index p + dy*W + dx; the
    # circular roll's wrapped columns are exactly the ones the mask zeroes.
    for kh in range(KH):
        for kw in range(KW):
            dy, dx = kh - ph, kw - pw
            d = dy * W + dx
            t = x if d == 0 else pltpu.roll(x, shift=(-d) % NHW, axis=1)
            ok = None
            if dy > 0:
                ok = row < (H - dy) - 0.5
            elif dy < 0:
                ok = row > (-dy) - 0.5
            if dx > 0:
                c = col < (W - dx) - 0.5
                ok = c if ok is None else (ok & c)
            elif dx < 0:
                c = col > (-dx) - 0.5
                ok = c if ok is None else (ok & c)
            if ok is not None:
                t = t * ok.astype(t.dtype)              # (1, NHW) lane mask
            k = kh * KW + kw
            rhs_ref[pl.ds(k * Cpad, Cpad), :] = t

    # --- one MXU matmul for all batch elements: (Cout, K) @ (K, N*HW) -------
    y = jnp.dot(w2_ref[...], rhs_ref[...],
                preferred_element_type=jnp.float32)     # (Cout, NHW) f32

    # --- BatchNorm2d: training-mode batch stats (biased variance), one pass -
    inv_m = 1.0 / NHW
    s1 = jnp.sum(y, axis=1, keepdims=True)              # (Cout, 1)
    s2 = jnp.sum(y * y, axis=1, keepdims=True)          # (Cout, 1)
    mean = s1 * inv_m
    var = s2 * inv_m - mean * mean
    inv_std = lax.rsqrt(var + eps)
    scale = gb_ref[:, 0:1] * inv_std                    # gamma * inv_std
    shift = gb_ref[:, 1:2] - mean * scale               # beta - mean*scale

    # Lane-aligned per-image stores; output stays NCHW-native in HBM.
    for n in range(N):
        o_ref[n] = (y[:, n * HW:(n + 1) * HW] * scale + shift).astype(o_ref.dtype)


# ----------------------------------------------------------------------------
# ConvBn2d forward (NCHW in, NCHW out — matches the PyTorch module)
# ----------------------------------------------------------------------------
def conv_bn_2d(x_nchw, w_oihw, gamma, beta, eps=1e-5):
    N, Cin, H, W = x_nchw.shape
    Cout, Cin_w, KH, KW = w_oihw.shape
    assert Cin_w == Cin
    # fused kernel covers the module defaults: odd kernel, 'same' pad, stride 1
    assert KH % 2 == 1 and KW % 2 == 1
    HW = H * W
    NHW = N * HW
    Cpad = ((Cin + 7) // 8) * 8
    Kp = KH * KW * Cpad

    # wrapper plumbing: one tiny transpose+pad of x, weight repack, param merge
    x2 = jnp.transpose(x_nchw, (1, 0, 2, 3)).reshape(Cin, NHW).astype(jnp.float32)
    if Cpad != Cin:
        x2 = jnp.pad(x2, ((0, Cpad - Cin), (0, 0)))

    w2 = jnp.transpose(w_oihw, (0, 2, 3, 1)).astype(jnp.float32)  # (Cout,KH,KW,Cin)
    if Cpad != Cin:
        w2 = jnp.pad(w2, ((0, 0), (0, 0), (0, 0), (0, Cpad - Cin)))
    w2 = w2.reshape(Cout, Kp)

    gb = jnp.stack([gamma.astype(jnp.float32), beta.astype(jnp.float32)],
                   axis=1)                                         # (Cout, 2)

    kernel = functools.partial(conv_bn_kernel, N=N, Cpad=Cpad, H=H, W=W,
                               KH=KH, KW=KW, eps=eps)
    cost = pl.CostEstimate(
        flops=2 * Cout * Kp * NHW,
        transcendentals=Cout,
        bytes_accessed=4 * (Cpad * NHW + Cout * Kp + Cout * 2 + N * Cout * HW))

    out = pl.pallas_call(
        kernel,
        out_shape=jax.ShapeDtypeStruct((N, Cout, HW), jnp.float32),
        grid=(1,),
        in_specs=[
            pl.BlockSpec((Cpad, NHW), lambda i: (0, 0)),
            pl.BlockSpec((Cout, Kp), lambda i: (0, 0)),
            pl.BlockSpec((Cout, 2), lambda i: (0, 0)),
        ],
        out_specs=pl.BlockSpec((N, Cout, HW), lambda i: (0, 0, 0)),
        scratch_shapes=[pltpu.VMEM((Kp, NHW), jnp.float32)],
        compiler_params=pltpu.CompilerParams(
            dimension_semantics=("arbitrary",)),
        cost_estimate=cost,
    )(x2, w2, gb)
    return out.reshape(N, Cout, H, W)


# ----------------------------------------------------------------------------
# Pure-JAX reference (for correctness check)
# ----------------------------------------------------------------------------
def conv_bn_2d_ref(x_nchw, w_oihw, gamma, beta, eps=1e-5):
    y = lax.conv_general_dilated(
        x_nchw, w_oihw, window_strides=(1, 1), padding=((1, 1), (1, 1)),
        dimension_numbers=("NCHW", "OIHW", "NCHW"))
    mean = jnp.mean(y, axis=(0, 2, 3), keepdims=True)
    var = jnp.mean((y - mean) ** 2, axis=(0, 2, 3), keepdims=True)
    return ((y - mean) * lax.rsqrt(var + eps)
            * gamma.reshape(1, -1, 1, 1) + beta.reshape(1, -1, 1, 1))


if __name__ == "__main__":
    # small shapes consistent with the module: batch=2, in_ch=4, out_ch=8, 16x16
    N, Cin, Cout, H, W = 2, 4, 8, 16, 16
    KH = KW = 3

    key = jax.random.PRNGKey(0)
    kx, kw_key, kg, kb = jax.random.split(key, 4)
    x = jax.random.normal(kx, (N, Cin, H, W), dtype=jnp.float32)
    w = jax.random.normal(kw_key, (Cout, Cin, KH, KW), dtype=jnp.float32) * 0.1
    gamma = 1.0 + 0.1 * jax.random.normal(kg, (Cout,), dtype=jnp.float32)
    beta = 0.1 * jax.random.normal(kb, (Cout,), dtype=jnp.float32)

    out = jax.jit(conv_bn_2d)(x, w, gamma, beta)
    out = jax.block_until_ready(out)

    ref = conv_bn_2d_ref(x, w, gamma, beta)
    assert out.shape == (N, Cout, H, W)
    assert jnp.allclose(out, ref, rtol=1e-4, atol=1e-3), (
        float(jnp.max(jnp.abs(out - ref))))

    print("KERNEL_OK")
</pallas_src>

<mosaic_0001>
module attributes {stable_mosaic.version = 11 : i64} {
  func.func @conv_bn_kernel(%arg0: i32, %arg1: memref<8x512xf32, #tpu.memory_space<vmem>>, %arg2: memref<8x72xf32, #tpu.memory_space<vmem>>, %arg3: memref<8x2xf32, #tpu.memory_space<vmem>>, %arg4: memref<2x8x256xf32, #tpu.memory_space<vmem>>, %arg5: memref<72x512xf32, #tpu.memory_space<vmem>>) attributes {dimension_semantics = [#tpu.dimension_semantics<arbitrary>], iteration_bounds = array<i64: 1>, scalar_prefetch = 0 : i64, scratch_operands = 1 : i64, tpu.core_type = #tpu.core_type<tc>, window_params = [{pipeline_mode = #tpu.pipeline_mode<synchronous>, transform_indices = @transform_0, window_bounds = array<i64: 8, 512>}, {pipeline_mode = #tpu.pipeline_mode<synchronous>, transform_indices = @transform_1, window_bounds = array<i64: 8, 72>}, {pipeline_mode = #tpu.pipeline_mode<synchronous>, transform_indices = @transform_2, window_bounds = array<i64: 8, 2>}, {pipeline_mode = #tpu.pipeline_mode<synchronous>, transform_indices = @transform_3, window_bounds = array<i64: 2, 8, 256>}]} {
    %c0 = arith.constant 0 : index
    %c0_0 = arith.constant 0 : index
    %0 = vector.load %arg1[%c0, %c0_0] : memref<8x512xf32, #tpu.memory_space<vmem>>, vector<8x512xf32>
    %1 = tpu.iota {dimensions = array<i32: 1>} : vector<1x512xi32>
    %2 = arith.sitofp %1 : vector<1x512xi32> to vector<1x512xf32>
    %cst = arith.constant 5.000000e-01 : f32
    %3 = vector.broadcast %cst : f32 to vector<1x512xf32>
    %4 = arith.addf %2, %3 : vector<1x512xf32>
    %cst_1 = arith.constant 3.906250e-03 : f32
    %5 = vector.broadcast %cst_1 : f32 to vector<1x512xf32>
    %6 = arith.mulf %4, %5 : vector<1x512xf32>
    %7 = math.floor %6 : vector<1x512xf32>
    %cst_2 = arith.constant 2.560000e+02 : f32
    %8 = vector.broadcast %cst_2 : f32 to vector<1x512xf32>
    %9 = arith.mulf %7, %8 : vector<1x512xf32>
    %10 = arith.subf %2, %9 : vector<1x512xf32>
    %cst_3 = arith.constant 5.000000e-01 : f32
    %11 = vector.broadcast %cst_3 : f32 to vector<1x512xf32>
    %12 = arith.addf %10, %11 : vector<1x512xf32>
    %cst_4 = arith.constant 6.250000e-02 : f32
    %13 = vector.broadcast %cst_4 : f32 to vector<1x512xf32>
    %14 = arith.mulf %12, %13 : vector<1x512xf32>
    %15 = math.floor %14 : vector<1x512xf32>
    %cst_5 = arith.constant 1.600000e+01 : f32
    %16 = vector.broadcast %cst_5 : f32 to vector<1x512xf32>
    %17 = arith.mulf %15, %16 : vector<1x512xf32>
    %18 = arith.subf %10, %17 : vector<1x512xf32>
    %c17_i32 = arith.constant 17 : i32
    %19 = tpu.dynamic_rotate %0 by %c17_i32 dim 1 : vector<8x512xf32>, i32 -> vector<8x512xf32>
    %cst_6 = arith.constant 5.000000e-01 : f32
    %20 = vector.broadcast %cst_6 : f32 to vector<1x512xf32>
    %21 = arith.cmpf ogt, %15, %20 : vector<1x512xf32>
    %cst_7 = arith.constant 5.000000e-01 : f32
    %22 = vector.broadcast %cst_7 : f32 to vector<1x512xf32>
    %23 = arith.cmpf ogt, %18, %22 : vector<1x512xf32>
    %24 = arith.andi %21, %23 : vector<1x512xi1>
    %25 = arith.extui %24 : vector<1x512xi1> to vector<1x512xi32>
    %26 = arith.sitofp %25 : vector<1x512xi32> to vector<1x512xf32>
    %27 = vector.broadcast %26 : vector<1x512xf32> to vector<8x512xf32>
    %28 = arith.mulf %19, %27 : vector<8x512xf32>
    %c0_8 = arith.constant 0 : index
    %c0_9 = arith.constant 0 : index
    %29 = vector.load %arg5[%c0_8, %c0_9] : memref<72x512xf32, #tpu.memory_space<vmem>>, vector<8x512xf32>
    tpu.vector_store %arg5[%c0_8, %c0_9], %28 {strides = array<i32>} : memref<72x512xf32, #tpu.memory_space<vmem>>, vector<8x512xf32>,
    %c16_i32 = arith.constant 16 : i32
    %30 = tpu.dynamic_rotate %0 by %c16_i32 dim 1 : vector<8x512xf32>, i32 -> vector<8x512xf32>
    %cst_10 = arith.constant 5.000000e-01 : f32
    %31 = vector.broadcast %cst_10 : f32 to vector<1x512xf32>
    %32 = arith.cmpf ogt, %15, %31 : vector<1x512xf32>
    %33 = arith.extui %32 : vector<1x512xi1> to vector<1x512xi32>
    %34 = arith.sitofp %33 : vector<1x512xi32> to vector<1x512xf32>
    %35 = vector.broadcast %34 : vector<1x512xf32> to vector<8x512xf32>
    %36 = arith.mulf %30, %35 : vector<8x512xf32>
    %c8 = arith.constant 8 : index
    %c0_11 = arith.constant 0 : index
    %37 = vector.load %arg5[%c8, %c0_11] : memref<72x512xf32, #tpu.memory_space<vmem>>, vector<8x512xf32>
    tpu.vector_store %arg5[%c8, %c0_11], %36 {strides = array<i32>} : memref<72x512xf32, #tpu.memory_space<vmem>>, vector<8x512xf32>,
    %c15_i32 = arith.constant 15 : i32
    %38 = tpu.dynamic_rotate %0 by %c15_i32 dim 1 : vector<8x512xf32>, i32 -> vector<8x512xf32>
    %cst_12 = arith.constant 5.000000e-01 : f32
    %39 = vector.broadcast %cst_12 : f32 to vector<1x512xf32>
    %40 = arith.cmpf ogt, %15, %39 : vector<1x512xf32>
    %cst_13 = arith.constant 1.450000e+01 : f32
    %41 = vector.broadcast %cst_13 : f32 to vector<1x512xf32>
    %42 = arith.cmpf olt, %18, %41 : vector<1x512xf32>
    %43 = arith.andi %40, %42 : vector<1x512xi1>
    %44 = arith.extui %43 : vector<1x512xi1> to vector<1x512xi32>
    %45 = arith.sitofp %44 : vector<1x512xi32> to vector<1x512xf32>
    %46 = vector.broadcast %45 : vector<1x512xf32> to vector<8x512xf32>
    %47 = arith.mulf %38, %46 : vector<8x512xf32>
    %c16 = arith.constant 16 : index
    %c0_14 = arith.constant 0 : index
    %48 = vector.load %arg5[%c16, %c0_14] : memref<72x512xf32, #tpu.memory_space<vmem>>, vector<8x512xf32>
    tpu.vector_store %arg5[%c16, %c0_14], %47 {strides = array<i32>} : memref<72x512xf32, #tpu.memory_space<vmem>>, vector<8x512xf32>,
    %c1_i32 = arith.constant 1 : i32
    %49 = tpu.dynamic_rotate %0 by %c1_i32 dim 1 : vector<8x512xf32>, i32 -> vector<8x512xf32>
    %cst_15 = arith.constant 5.000000e-01 : f32
    %50 = vector.broadcast %cst_15 : f32 to vector<1x512xf32>
    %51 = arith.cmpf ogt, %18, %50 : vector<1x512xf32>
    %52 = arith.extui %51 : vector<1x512xi1> to vector<1x512xi32>
    %53 = arith.sitofp %52 : vector<1x512xi32> to vector<1x512xf32>
    %54 = vector.broadcast %53 : vector<1x512xf32> to vector<8x512xf32>
    %55 = arith.mulf %49, %54 : vector<8x512xf32>
    %c24 = arith.constant 24 : index
    %c0_16 = arith.constant 0 : index
    %56 = vector.load %arg5[%c24, %c0_16] : memref<72x512xf32, #tpu.memory_space<vmem>>, vector<8x512xf32>
    tpu.vector_store %arg5[%c24, %c0_16], %55 {strides = array<i32>} : memref<72x512xf32, #tpu.memory_space<vmem>>, vector<8x512xf32>,
    %c32 = arith.constant 32 : index
    %c0_17 = arith.constant 0 : index
    %57 = vector.load %arg5[%c32, %c0_17] : memref<72x512xf32, #tpu.memory_space<vmem>>, vector<8x512xf32>
    tpu.vector_store %arg5[%c32, %c0_17], %0 {strides = array<i32>} : memref<72x512xf32, #tpu.memory_space<vmem>>, vector<8x512xf32>,
    %c511_i32 = arith.constant 511 : i32
    %58 = tpu.dynamic_rotate %0 by %c511_i32 dim 1 : vector<8x512xf32>, i32 -> vector<8x512xf32>
    %cst_18 = arith.constant 1.450000e+01 : f32
    %59 = vector.broadcast %cst_18 : f32 to vector<1x512xf32>
    %60 = arith.cmpf olt, %18, %59 : vector<1x512xf32>
    %61 = arith.extui %60 : vector<1x512xi1> to vector<1x512xi32>
    %62 = arith.sitofp %61 : vector<1x512xi32> to vector<1x512xf32>
    %63 = vector.broadcast %62 : vector<1x512xf32> to vector<8x512xf32>
    %64 = arith.mulf %58, %63 : vector<8x512xf32>
    %c40 = arith.constant 40 : index
    %c0_19 = arith.constant 0 : index
    %65 = vector.load %arg5[%c40, %c0_19] : memref<72x512xf32, #tpu.memory_space<vmem>>, vector<8x512xf32>
    tpu.vector_store %arg5[%c40, %c0_19], %64 {strides = array<i32>} : memref<72x512xf32, #tpu.memory_space<vmem>>, vector<8x512xf32>,
    %c497_i32 = arith.constant 497 : i32
    %66 = tpu.dynamic_rotate %0 by %c497_i32 dim 1 : vector<8x512xf32>, i32 -> vector<8x512xf32>
    %cst_20 = arith.constant 1.450000e+01 : f32
    %67 = vector.broadcast %cst_20 : f32 to vector<1x512xf32>
    %68 = arith.cmpf olt, %15, %67 : vector<1x512xf32>
    %cst_21 = arith.constant 5.000000e-01 : f32
    %69 = vector.broadcast %cst_21 : f32 to vector<1x512xf32>
    %70 = arith.cmpf ogt, %18, %69 : vector<1x512xf32>
    %71 = arith.andi %68, %70 : vector<1x512xi1>
    %72 = arith.extui %71 : vector<1x512xi1> to vector<1x512xi32>
    %73 = arith.sitofp %72 : vector<1x512xi32> to vector<1x512xf32>
    %74 = vector.broadcast %73 : vector<1x512xf32> to vector<8x512xf32>
    %75 = arith.mulf %66, %74 : vector<8x512xf32>
    %c48 = arith.constant 48 : index
    %c0_22 = arith.constant 0 : index
    %76 = vector.load %arg5[%c48, %c0_22] : memref<72x512xf32, #tpu.memory_space<vmem>>, vector<8x512xf32>
    tpu.vector_store %arg5[%c48, %c0_22], %75 {strides = array<i32>} : memref<72x512xf32, #tpu.memory_space<vmem>>, vector<8x512xf32>,
    %c496_i32 = arith.constant 496 : i32
    %77 = tpu.dynamic_rotate %0 by %c496_i32 dim 1 : vector<8x512xf32>, i32 -> vector<8x512xf32>
    %cst_23 = arith.constant 1.450000e+01 : f32
    %78 = vector.broadcast %cst_23 : f32 to vector<1x512xf32>
    %79 = arith.cmpf olt, %15, %78 : vector<1x512xf32>
    %80 = arith.extui %79 : vector<1x512xi1> to vector<1x512xi32>
    %81 = arith.sitofp %80 : vector<1x512xi32> to vector<1x512xf32>
    %82 = vector.broadcast %81 : vector<1x512xf32> to vector<8x512xf32>
    %83 = arith.mulf %77, %82 : vector<8x512xf32>
    %c56 = arith.constant 56 : index
    %c0_24 = arith.constant 0 : index
    %84 = vector.load %arg5[%c56, %c0_24] : memref<72x512xf32, #tpu.memory_space<vmem>>, vector<8x512xf32>
    tpu.vector_store %arg5[%c56, %c0_24], %83 {strides = array<i32>} : memref<72x512xf32, #tpu.memory_space<vmem>>, vector<8x512xf32>,
    %c495_i32 = arith.constant 495 : i32
    %85 = tpu.dynamic_rotate %0 by %c495_i32 dim 1 : vector<8x512xf32>, i32 -> vector<8x512xf32>
    %cst_25 = arith.constant 1.450000e+01 : f32
    %86 = vector.broadcast %cst_25 : f32 to vector<1x512xf32>
    %87 = arith.cmpf olt, %15, %86 : vector<1x512xf32>
    %cst_26 = arith.constant 1.450000e+01 : f32
    %88 = vector.broadcast %cst_26 : f32 to vector<1x512xf32>
    %89 = arith.cmpf olt, %18, %88 : vector<1x512xf32>
    %90 = arith.andi %87, %89 : vector<1x512xi1>
    %91 = arith.extui %90 : vector<1x512xi1> to vector<1x512xi32>
    %92 = arith.sitofp %91 : vector<1x512xi32> to vector<1x512xf32>
    %93 = vector.broadcast %92 : vector<1x512xf32> to vector<8x512xf32>
    %94 = arith.mulf %85, %93 : vector<8x512xf32>
    %c64 = arith.constant 64 : index
    %c0_27 = arith.constant 0 : index
    %95 = vector.load %arg5[%c64, %c0_27] : memref<72x512xf32, #tpu.memory_space<vmem>>, vector<8x512xf32>
    tpu.vector_store %arg5[%c64, %c0_27], %94 {strides = array<i32>} : memref<72x512xf32, #tpu.memory_space<vmem>>, vector<8x512xf32>,
    %c0_28 = arith.constant 0 : index
    %c0_29 = arith.constant 0 : index
    %96 = vector.load %arg2[%c0_28, %c0_29] : memref<8x72xf32, #tpu.memory_space<vmem>>, vector<8x72xf32>
    %c0_30 = arith.constant 0 : index
    %c0_31 = arith.constant 0 : index
    %97 = vector.load %arg5[%c0_30, %c0_31] : memref<72x512xf32, #tpu.memory_space<vmem>>, vector<72x512xf32>
    %cst_32 = arith.constant dense<0.000000e+00> : vector<8x512xf32>
    %98 = tpu.matmul %96, %97, %cst_32 {dimension_numbers = #tpu.dot_dimension_numbers<[1], [0], [0], [1], [0, 0, 1, 1], [], []>} : vector<8x72xf32>, vector<72x512xf32>, vector<8x512xf32> -> vector<8x512xf32>
    %cst_33 = arith.constant dense<0.000000e+00> : vector<8xf32>
    %99 = vector.multi_reduction <add>, %98, %cst_33 [1] : vector<8x512xf32> to vector<8xf32>
    %100 = vector.shape_cast %99 : vector<8xf32> to vector<8x1xf32>
    %101 = arith.mulf %98, %98 : vector<8x512xf32>
    %cst_34 = arith.constant dense<0.000000e+00> : vector<8xf32>
    %102 = vector.multi_reduction <add>, %101, %cst_34 [1] : vector<8x512xf32> to vector<8xf32>
    %103 = vector.shape_cast %102 : vector<8xf32> to vector<8x1xf32>
    %cst_35 = arith.constant 0.001953125 : f32
    %104 = vector.broadcast %cst_35 : f32 to vector<8x1xf32>
    %105 = arith.mulf %100, %104 : vector<8x1xf32>
    %cst_36 = arith.constant 0.001953125 : f32
    %106 = vector.broadcast %cst_36 : f32 to vector<8x1xf32>
    %107 = arith.mulf %103, %106 : vector<8x1xf32>
    %108 = arith.mulf %105, %105 : vector<8x1xf32>
    %109 = arith.subf %107, %108 : vector<8x1xf32>
    %cst_37 = arith.constant 9.99999974E-6 : f32
    %110 = vector.broadcast %cst_37 : f32 to vector<8x1xf32>
    %111 = arith.addf %109, %110 : vector<8x1xf32>
    %112 = math.rsqrt %111 : vector<8x1xf32>
    %c0_38 = arith.constant 0 : index
    %c0_39 = arith.constant 0 : index
    %113 = vector.load %arg3[%c0_38, %c0_39] : memref<8x2xf32, #tpu.memory_space<vmem>>, vector<8x1xf32>
    %114 = arith.mulf %113, %112 : vector<8x1xf32>
    %c0_40 = arith.constant 0 : index
    %c1 = arith.constant 1 : index
    %115 = vector.load %arg3[%c0_40, %c1] : memref<8x2xf32, #tpu.memory_space<vmem>>, vector<8x1xf32>
    %116 = arith.mulf %105, %114 : vector<8x1xf32>
    %117 = arith.subf %115, %116 : vector<8x1xf32>
    %118 = vector.extract_strided_slice %98 {offsets = [0, 0], sizes = [8, 256], strides = [1, 1]} : vector<8x512xf32> to vector<8x256xf32>
    %119 = vector.broadcast %114 : vector<8x1xf32> to vector<8x256xf32>
    %120 = arith.mulf %118, %119 : vector<8x256xf32>
    %121 = vector.broadcast %117 : vector<8x1xf32> to vector<8x256xf32>
    %122 = arith.addf %120, %121 : vector<8x256xf32>
    %c0_41 = arith.constant 0 : index
    %c0_42 = arith.constant 0 : index
    %c0_43 = arith.constant 0 : index
    %123 = vector.load %arg4[%c0_41, %c0_42, %c0_43] : memref<2x8x256xf32, #tpu.memory_space<vmem>>, vector<1x8x256xf32>
    %124 = vector.shape_cast %123 : vector<1x8x256xf32> to vector<8x256xf32>
    %125 = vector.shape_cast %122 : vector<8x256xf32> to vector<1x8x256xf32>
    tpu.vector_store %arg4[%c0_41, %c0_42, %c0_43], %125 {strides = array<i32>} : memref<2x8x256xf32, #tpu.memory_space<vmem>>, vector<1x8x256xf32>,
    %126 = vector.extract_strided_slice %98 {offsets = [0, 256], sizes = [8, 256], strides = [1, 1]} : vector<8x512xf32> to vector<8x256xf32>
    %127 = vector.broadcast %114 : vector<8x1xf32> to vector<8x256xf32>
    %128 = arith.mulf %126, %127 : vector<8x256xf32>
    %129 = vector.broadcast %117 : vector<8x1xf32> to vector<8x256xf32>
    %130 = arith.addf %128, %129 : vector<8x256xf32>
    %c1_44 = arith.constant 1 : index
    %c0_45 = arith.constant 0 : index
    %c0_46 = arith.constant 0 : index
    %131 = vector.load %arg4[%c1_44, %c0_45, %c0_46] : memref<2x8x256xf32, #tpu.memory_space<vmem>>, vector<1x8x256xf32>
    %132 = vector.shape_cast %131 : vector<1x8x256xf32> to vector<8x256xf32>
    %133 = vector.shape_cast %130 : vector<8x256xf32> to vector<1x8x256xf32>
    tpu.vector_store %arg4[%c1_44, %c0_45, %c0_46], %133 {strides = array<i32>} : memref<2x8x256xf32, #tpu.memory_space<vmem>>, vector<1x8x256xf32>,
    return
  }
  func.func @transform_0(%arg0: i32) -> (i32, i32) {
    %c0_i32 = arith.constant 0 : i32
    %c0_i32_0 = arith.constant 0 : i32
    %c0_i32_1 = arith.constant 0 : i32
    return %c0_i32, %c0_i32_0 : i32, i32
  }
  func.func @transform_1(%arg0: i32) -> (i32, i32) {
    %c0_i32 = arith.constant 0 : i32
    %c0_i32_0 = arith.constant 0 : i32
    %c0_i32_1 = arith.constant 0 : i32
    return %c0_i32, %c0_i32_0 : i32, i32
  }
  func.func @transform_2(%arg0: i32) -> (i32, i32) {
    %c0_i32 = arith.constant 0 : i32
    %c0_i32_0 = arith.constant 0 : i32
    %c0_i32_1 = arith.constant 0 : i32
    return %c0_i32, %c0_i32_0 : i32, i32
  }
  func.func @transform_3(%arg0: i32) -> (i32, i32, i32) {
    %c0_i32 = arith.constant 0 : i32
    %c0_i32_0 = arith.constant 0 : i32
    %c0_i32_1 = arith.constant 0 : i32
    %c0_i32_2 = arith.constant 0 : i32
    return %c0_i32, %c0_i32_0, %c0_i32_1 : i32, i32, i32
  }
}

</mosaic_0001>

<llo_original>
// kernel: conv_bn_2d.1
$region0: #{conv_bn_2d.1}
  #allocation0 [shape = 'u32[]', space=smem, size = 0x4, offset = 0x4, fixed_abs, tag = 'smem constant byte address 0x4 - core index']
  #allocation1 [shape = 'u32[144,128]{1,0:T(1,128)}', space=vmem, size = 0x12000, scoped, tag = 'internal scratch']
  #allocation2 [shape = 'f32[72,512]{1,0:T(8,128)}', space=vmem, size = 0x24000, scoped, tag = 'scratch operand']
  %s0 = inlined_call_operand.vmem [shape: f32[8,512], index: 0, kind: input, shape index: {}]
  %s1 = inlined_call_operand.vmem [shape: f32[8,72], index: 1, kind: input, shape index: {}]
  %s2 = inlined_call_operand.vmem [shape: f32[8,2], index: 2, kind: input, shape index: {}]
  %s3 = inlined_call_operand.vmem [shape: f32[2,8,256], index: 3, kind: output, shape index: {}]
  %s4 = sld [smem:[#allocation0]]
  $region22: #{conv_bn_2d.1} parent=0
    _
  %s6 = ssub.s32 1, %s4
  %s7 = scalar_select 0, %s6, %s4
  // Predicated region
  $region2: #{conv_bn_2d.1} parent=0 // pred_check
    _
  $region3: #{conv_bn_2d.1} parent=0 // pred_check_branch
    %9 = sbr.rel (0) target = $region5
  $region4: #{conv_bn_2d.1} parent=0 // pred_region
    _
  $region5: #{conv_bn_2d.1} parent=0 // pred_fallthru
    _
  // Predicated region
  $region6: #{conv_bn_2d.1} parent=0 // pred_check
    _
  $region7: #{conv_bn_2d.1} parent=0 // pred_check_branch
    %11 = sbr.rel (0) target = $region9
  $region8: #{conv_bn_2d.1} parent=0 // pred_region
    _
  $region9: #{conv_bn_2d.1} parent=0 // pred_fallthru
    _
  // Predicated region
  $region10: #{conv_bn_2d.1} parent=0 // pred_check
    _
  $region11: #{conv_bn_2d.1} parent=0 // pred_check_branch
    %13 = sbr.rel (0) target = $region13
  $region12: #{conv_bn_2d.1} parent=0 // pred_region
    _
  $region13: #{conv_bn_2d.1} parent=0 // pred_fallthru
    _
  %v14 = vld [vmem:[%s0] sm:$0xff]
  %v15 = vld [vmem:[%s0 + $0x8] sm:$0xff]
  %v16 = vld [vmem:[%s0 + $0x10] sm:$0xff]
  %v17 = vld [vmem:[%s0 + $0x18] sm:$0xff]
  %v18 = vlaneseq
  %v19 = vand.u32 %v18, 127
  %v20 = vadd.s32 %v19, 128
  %v21 = vadd.s32 %v19, 256
  %v22 = vadd.s32 %v19, 384
  %v23 = vcvt.s32.f32 %v19
  %v24 = vcvt.s32.f32 %v20
  %v25 = vcvt.s32.f32 %v21
  %v26 = vcvt.s32.f32 %v22
  %v27 = vadd.f32 %v23, 0.5
  %v28 = vadd.f32 %v24, 0.5
  %v29 = vadd.f32 %v25, 0.5
  %v30 = vadd.f32 %v26, 0.5
  %v31 = vmul.f32 %v27, 0.00390625
  %v32 = vmul.f32 %v28, 0.00390625
  %v33 = vmul.f32 %v29, 0.00390625
  %v34 = vmul.f32 %v30, 0.00390625
  %v35 = vfloor.f32 %v31
  %v36 = vfloor.f32 %v32
  %v37 = vfloor.f32 %v33
  %v38 = vfloor.f32 %v34
  %v39 = vmul.f32 %v35, 256.0
  %v40 = vmul.f32 %v36, 256.0
  %v41 = vmul.f32 %v37, 256.0
  %v42 = vmul.f32 %v38, 256.0
  %v43 = vsub.f32 %v23, %v39
  %v44 = vsub.f32 %v24, %v40
  %v45 = vsub.f32 %v25, %v41
  %v46 = vsub.f32 %v26, %v42
  %v47 = vadd.f32 %v43, 0.5
  %v48 = vadd.f32 %v44, 0.5
  %v49 = vadd.f32 %v45, 0.5
  %v50 = vadd.f32 %v46, 0.5
  %v51 = vmul.f32 %v47, 0.0625
  %v52 = vmul.f32 %v48, 0.0625
  %v53 = vmul.f32 %v49, 0.0625
  %v54 = vmul.f32 %v50, 0.0625
  %v55 = vfloor.f32 %v51
  %v56 = vfloor.f32 %v52
  %v57 = vfloor.f32 %v53
  %v58 = vfloor.f32 %v54
  %v59 = vmul.f32 %v55, 16.0
  %v60 = vmul.f32 %v56, 16.0
  %v61 = vmul.f32 %v57, 16.0
  %v62 = vmul.f32 %v58, 16.0
  %v63 = vsub.f32 %v43, %v59
  %v64 = vsub.f32 %v44, %v60
  %v65 = vsub.f32 %v45, %v61
  %v66 = vsub.f32 %v46, %v62
  %67 = vrot.lane.b32.xlu0 %v14, 17
  %v68 = vpop.permute.xlu0 %67
  %69 = vrot.lane.b32.xlu0 %v15, 17
  %v70 = vpop.permute.xlu0 %69
  %71 = vrot.lane.b32.xlu0 %v16, 17
  %v72 = vpop.permute.xlu0 %71
  %73 = vrot.lane.b32.xlu0 %v17, 17
  %v74 = vpop.permute.xlu0 %73
  %vm75 = vcmp.lt.s32.totalorder %v19, 17
  %v76 = vsel %vm75, %v72, %v74
  %v77 = vsel %vm75, %v70, %v72
  %v78 = vsel %vm75, %v68, %v70
  %v79 = vsel %vm75, %v74, %v68
  %vm80 = vcmp.gt.f32.partialorder %v55, 0.5
  %vm81 = vcmp.gt.f32.partialorder %v56, 0.5
  %vm82 = vcmp.gt.f32.partialorder %v57, 0.5
  %vm83 = vcmp.gt.f32.partialorder %v58, 0.5
  %vm84 = vcmp.gt.f32.partialorder %v63, 0.5
  %vm85 = vcmp.gt.f32.partialorder %v64, 0.5
  %vm86 = vcmp.gt.f32.partialorder %v65, 0.5
  %vm87 = vcmp.gt.f32.partialorder %v66, 0.5
  %vm88 = vmand %vm80, %vm84
  %vm89 = vmand %vm81, %vm85
  %vm90 = vmand %vm82, %vm86
  %vm91 = vmand %vm83, %vm87
  %v92 = vsel %vm88, 1, 0
  %v93 = vsel %vm89, 1, 0
  %v94 = vsel %vm90, 1, 0
  %v95 = vsel %vm91, 1, 0
  %v96 = vcvt.s32.f32 %v92
  %v97 = vcvt.s32.f32 %v93
  %v98 = vcvt.s32.f32 %v94
  %v99 = vcvt.s32.f32 %v95
  %v100 = vmul.f32 %v79, %v96
  %v101 = vmul.f32 %v78, %v97
  %v102 = vmul.f32 %v77, %v98
  %v103 = vmul.f32 %v76, %v99
  %104 = vst [vmem:[#allocation2] sm:$0xff] %v100
  %105 = vst [vmem:[#allocation2 + $0x8] sm:$0xff] %v101
  %106 = vst [vmem:[#allocation2 + $0x10] sm:$0xff] %v102
  %107 = vst [vmem:[#allocation2 + $0x18] sm:$0xff] %v103
  %108 = vrot.lane.b32.xlu0 %v14, 16
  %v109 = vpop.permute.xlu0 %108
  %110 = vrot.lane.b32.xlu0 %v15, 16
  %v111 = vpop.permute.xlu0 %110
  %112 = vrot.lane.b32.xlu0 %v16, 16
  %v113 = vpop.permute.xlu0 %112
  %114 = vrot.lane.b32.xlu0 %v17, 16
  %v115 = vpop.permute.xlu0 %114
  %vm116 = vcmp.lt.s32.totalorder %v19, 16
  %v117 = vsel %vm116, %v113, %v115
  %v118 = vsel %vm116, %v111, %v113
  %v119 = vsel %vm116, %v109, %v111
  %v120 = vsel %vm116, %v115, %v109
  %v121 = vsel %vm80, 1, 0
  %v122 = vsel %vm81, 1, 0
  %v123 = vsel %vm82, 1, 0
  %v124 = vsel %vm83, 1, 0
  %v125 = vcvt.s32.f32 %v121
  %v126 = vcvt.s32.f32 %v122
  %v127 = vcvt.s32.f32 %v123
  %v128 = vcvt.s32.f32 %v124
  %v129 = vmul.f32 %v120, %v125
  %v130 = vmul.f32 %v119, %v126
  %v131 = vmul.f32 %v118, %v127
  %v132 = vmul.f32 %v117, %v128
  %133 = vst [vmem:[#allocation2 + $0x20] sm:$0xff] %v129
  %134 = vst [vmem:[#allocation2 + $0x28] sm:$0xff] %v130
  %135 = vst [vmem:[#allocation2 + $0x30] sm:$0xff] %v131
  %136 = vst [vmem:[#allocation2 + $0x38] sm:$0xff] %v132
  %137 = vrot.lane.b32.xlu0 %v14, 15
  %v138 = vpop.permute.xlu0 %137
  %139 = vrot.lane.b32.xlu0 %v15, 15
  %v140 = vpop.permute.xlu0 %139
  %141 = vrot.lane.b32.xlu0 %v16, 15
  %v142 = vpop.permute.xlu0 %141
  %143 = vrot.lane.b32.xlu0 %v17, 15
  %v144 = vpop.permute.xlu0 %143
  %vm145 = vcmp.lt.s32.totalorder %v19, 15
  %v146 = vsel %vm145, %v142, %v144
  %v147 = vsel %vm145, %v140, %v142
  %v148 = vsel %vm145, %v138, %v140
  %v149 = vsel %vm145, %v144, %v138
  %vm150 = vcmp.lt.f32.partialorder %v63, 14.5
  %vm151 = vcmp.lt.f32.partialorder %v64, 14.5
  %vm152 = vcmp.lt.f32.partialorder %v65, 14.5
  %vm153 = vcmp.lt.f32.partialorder %v66, 14.5
  %vm154 = vmand %vm80, %vm150
  %vm155 = vmand %vm81, %vm151
  %vm156 = vmand %vm82, %vm152
  %vm157 = vmand %vm83, %vm153
  %v158 = vsel %vm154, 1, 0
  %v159 = vsel %vm155, 1, 0
  %v160 = vsel %vm156, 1, 0
  %v161 = vsel %vm157, 1, 0
  %v162 = vcvt.s32.f32 %v158
  %v163 = vcvt.s32.f32 %v159
  %v164 = vcvt.s32.f32 %v160
  %v165 = vcvt.s32.f32 %v161
  %v166 = vmul.f32 %v149, %v162
  %v167 = vmul.f32 %v148, %v163
  %v168 = vmul.f32 %v147, %v164
  %v169 = vmul.f32 %v146, %v165
  %170 = vst [vmem:[#allocation2 + $0x40] sm:$0xff] %v166
  %171 = vst [vmem:[#allocation2 + $0x48] sm:$0xff] %v167
  %172 = vst [vmem:[#allocation2 + $0x50] sm:$0xff] %v168
  %173 = vst [vmem:[#allocation2 + $0x58] sm:$0xff] %v169
  %174 = vrot.lane.b32.xlu0 %v14, 1
  %v175 = vpop.permute.xlu0 %174
  %176 = vrot.lane.b32.xlu0 %v15, 1
  %v177 = vpop.permute.xlu0 %176
  %178 = vrot.lane.b32.xlu0 %v16, 1
  %v179 = vpop.permute.xlu0 %178
  %180 = vrot.lane.b32.xlu0 %v17, 1
  %v181 = vpop.permute.xlu0 %180
  %vm182 = vcmp.lt.s32.totalorder %v19, 1
  %v183 = vsel %vm182, %v179, %v181
  %v184 = vsel %vm182, %v177, %v179
  %v185 = vsel %vm182, %v175, %v177
  %v186 = vsel %vm182, %v181, %v175
  %v187 = vsel %vm84, 1, 0
  %v188 = vsel %vm85, 1, 0
  %v189 = vsel %vm86, 1, 0
  %v190 = vsel %vm87, 1, 0
  %v191 = vcvt.s32.f32 %v187
  %v192 = vcvt.s32.f32 %v188
  %v193 = vcvt.s32.f32 %v189
  %v194 = vcvt.s32.f32 %v190
  %v195 = vmul.f32 %v186, %v191
  %v196 = vmul.f32 %v185, %v192
  %v197 = vmul.f32 %v184, %v193
  %v198 = vmul.f32 %v183, %v194
  %199 = vst [vmem:[#allocation2 + $0x60] sm:$0xff] %v195
  %200 = vst [vmem:[#allocation2 + $0x68] sm:$0xff] %v196
  %201 = vst [vmem:[#allocation2 + $0x70] sm:$0xff] %v197
  %202 = vst [vmem:[#allocation2 + $0x78] sm:$0xff] %v198
  %203 = vst [vmem:[#allocation2 + $0x80] sm:$0xff] %v14
  %204 = vst [vmem:[#allocation2 + $0x88] sm:$0xff] %v15
  %205 = vst [vmem:[#allocation2 + $0x90] sm:$0xff] %v16
  %206 = vst [vmem:[#allocation2 + $0x98] sm:$0xff] %v17
  %207 = vrot.lane.b32.xlu0 %v14, 127
  %v208 = vpop.permute.xlu0 %207
  %209 = vrot.lane.b32.xlu0 %v15, 127
  %v210 = vpop.permute.xlu0 %209
  %211 = vrot.lane.b32.xlu0 %v16, 127
  %v212 = vpop.permute.xlu0 %211
  %213 = vrot.lane.b32.xlu0 %v17, 127
  %v214 = vpop.permute.xlu0 %213
  %vm215 = vcmp.lt.s32.totalorder %v19, 127
  %v216 = vsel %vm215, %v212, %v214
  %v217 = vsel %vm215, %v210, %v212
  %v218 = vsel %vm215, %v208, %v210
  %v219 = vsel %vm215, %v214, %v208
  %v220 = vsel %vm150, 1, 0
  %v221 = vsel %vm151, 1, 0
  %v222 = vsel %vm152, 1, 0
  %v223 = vsel %vm153, 1, 0
  %v224 = vcvt.s32.f32 %v220
  %v225 = vcvt.s32.f32 %v221
  %v226 = vcvt.s32.f32 %v222
  %v227 = vcvt.s32.f32 %v223
  %v228 = vmul.f32 %v218, %v224
  %v229 = vmul.f32 %v217, %v225
  %v230 = vmul.f32 %v216, %v226
  %v231 = vmul.f32 %v219, %v227
  %232 = vst [vmem:[#allocation2 + $0xa0] sm:$0xff] %v228
  %233 = vst [vmem:[#allocation2 + $0xa8] sm:$0xff] %v229
  %234 = vst [vmem:[#allocation2 + $0xb0] sm:$0xff] %v230
  %235 = vst [vmem:[#allocation2 + $0xb8] sm:$0xff] %v231
  %236 = vrot.lane.b32.xlu0 %v14, 113
  %v237 = vpop.permute.xlu0 %236
  %238 = vrot.lane.b32.xlu0 %v15, 113
  %v239 = vpop.permute.xlu0 %238
  %240 = vrot.lane.b32.xlu0 %v16, 113
  %v241 = vpop.permute.xlu0 %240
  %242 = vrot.lane.b32.xlu0 %v17, 113
  %v243 = vpop.permute.xlu0 %242
  %vm244 = vcmp.lt.s32.totalorder %v19, 113
  %v245 = vsel %vm244, %v241, %v243
  %v246 = vsel %vm244, %v239, %v241
  %v247 = vsel %vm244, %v237, %v239
  %v248 = vsel %vm244, %v243, %v237
  %vm249 = vcmp.lt.f32.partialorder %v55, 14.5
  %vm250 = vcmp.lt.f32.partialorder %v56, 14.5
  %vm251 = vcmp.lt.f32.partialorder %v57, 14.5
  %vm252 = vcmp.lt.f32.partialorder %v58, 14.5
  %vm253 = vmand %vm249, %vm84
  %vm254 = vmand %vm250, %vm85
  %vm255 = vmand %vm251, %vm86
  %vm256 = vmand %vm252, %vm87
  %v257 = vsel %vm253, 1, 0
  %v258 = vsel %vm254, 1, 0
  %v259 = vsel %vm255, 1, 0
  %v260 = vsel %vm256, 1, 0
  %v261 = vcvt.s32.f32 %v257
  %v262 = vcvt.s32.f32 %v258
  %v263 = vcvt.s32.f32 %v259
  %v264 = vcvt.s32.f32 %v260
  %v265 = vmul.f32 %v247, %v261
  %v266 = vmul.f32 %v246, %v262
  %v267 = vmul.f32 %v245, %v263
  %v268 = vmul.f32 %v248, %v264
  %269 = vst [vmem:[#allocation2 + $0xc0] sm:$0xff] %v265
  %270 = vst [vmem:[#allocation2 + $0xc8] sm:$0xff] %v266
  %271 = vst [vmem:[#allocation2 + $0xd0] sm:$0xff] %v267
  %272 = vst [vmem:[#allocation2 + $0xd8] sm:$0xff] %v268
  %273 = vrot.lane.b32.xlu0 %v14, 112
  %v274 = vpop.permute.xlu0 %273
  %275 = vrot.lane.b32.xlu0 %v15, 112
  %v276 = vpop.permute.xlu0 %275
  %277 = vrot.lane.b32.xlu0 %v16, 112
  %v278 = vpop.permute.xlu0 %277
  %279 = vrot.lane.b32.xlu0 %v17, 112
  %v280 = vpop.permute.xlu0 %279
  %vm281 = vcmp.lt.s32.totalorder %v19, 112
  %v282 = vsel %vm281, %v278, %v280
  %v283 = vsel %vm281, %v276, %v278
  %v284 = vsel %vm281, %v274, %v276
  %v285 = vsel %vm281, %v280, %v274
  %v286 = vsel %vm249, 1, 0
  %v287 = vsel %vm250, 1, 0
  %v288 = vsel %vm251, 1, 0
  %v289 = vsel %vm252, 1, 0
  %v290 = vcvt.s32.f32 %v286
  %v291 = vcvt.s32.f32 %v287
  %v292 = vcvt.s32.f32 %v288
  %v293 = vcvt.s32.f32 %v289
  %v294 = vmul.f32 %v284, %v290
  %v295 = vmul.f32 %v283, %v291
  %v296 = vmul.f32 %v282, %v292
  %v297 = vmul.f32 %v285, %v293
  %298 = vst [vmem:[#allocation2 + $0xe0] sm:$0xff] %v294
  %299 = vst [vmem:[#allocation2 + $0xe8] sm:$0xff] %v295
  %300 = vst [vmem:[#allocation2 + $0xf0] sm:$0xff] %v296
  %301 = vst [vmem:[#allocation2 + $0xf8] sm:$0xff] %v297
  %302 = vrot.lane.b32.xlu0 %v14, 111
  %v303 = vpop.permute.xlu0 %302
  %304 = vrot.lane.b32.xlu0 %v15, 111
  %v305 = vpop.permute.xlu0 %304
  %306 = vrot.lane.b32.xlu0 %v16, 111
  %v307 = vpop.permute.xlu0 %306
  %308 = vrot.lane.b32.xlu0 %v17, 111
  %v309 = vpop.permute.xlu0 %308
  %vm310 = vcmp.lt.s32.totalorder %v19, 111
  %v311 = vsel %vm310, %v307, %v309
  %v312 = vsel %vm310, %v305, %v307
  %v313 = vsel %vm310, %v303, %v305
  %v314 = vsel %vm310, %v309, %v303
  %vm315 = vmand %vm249, %vm150
  %vm316 = vmand %vm250, %vm151
  %vm317 = vmand %vm251, %vm152
  %vm318 = vmand %vm252, %vm153
  %v319 = vsel %vm315, 1, 0
  %v320 = vsel %vm316, 1, 0
  %v321 = vsel %vm317, 1, 0
  %v322 = vsel %vm318, 1, 0
  %v323 = vcvt.s32.f32 %v319
  %v324 = vcvt.s32.f32 %v320
  %v325 = vcvt.s32.f32 %v321
  %v326 = vcvt.s32.f32 %v322
  %v327 = vmul.f32 %v313, %v323
  %v328 = vmul.f32 %v312, %v324
  %v329 = vmul.f32 %v311, %v325
  %v330 = vmul.f32 %v314, %v326
  %331 = vst [vmem:[#allocation2 + $0x100] sm:$0xff] %v327
  %332 = vst [vmem:[#allocation2 + $0x108] sm:$0xff] %v328
  %333 = vst [vmem:[#allocation2 + $0x110] sm:$0xff] %v329
  %334 = vst [vmem:[#allocation2 + $0x118] sm:$0xff] %v330
  %v335 = vld [vmem:[%s1] sm:$0xff]
  %v336 = vld [vmem:[#allocation2] sm:$0xff]
  %v337 = vld [vmem:[#allocation2 + $0x8] sm:$0xff]
  %v338 = vld [vmem:[#allocation2 + $0x10] sm:$0xff]
  %v339 = vld [vmem:[#allocation2 + $0x18] sm:$0xff]
  %v340 = vld [vmem:[#allocation2 + $0x20] sm:$0xff]
  %v341 = vld [vmem:[#allocation2 + $0x28] sm:$0xff]
  %v342 = vld [vmem:[#allocation2 + $0x30] sm:$0xff]
  %v343 = vld [vmem:[#allocation2 + $0x38] sm:$0xff]
  %v344 = vld [vmem:[#allocation2 + $0x40] sm:$0xff]
  %v345 = vld [vmem:[#allocation2 + $0x48] sm:$0xff]
  %v346 = vld [vmem:[#allocation2 + $0x50] sm:$0xff]
  %v347 = vld [vmem:[#allocation2 + $0x58] sm:$0xff]
  %v348 = vld [vmem:[#allocation2 + $0x60] sm:$0xff]
  %v349 = vld [vmem:[#allocation2 + $0x68] sm:$0xff]
  %v350 = vld [vmem:[#allocation2 + $0x70] sm:$0xff]
  %v351 = vld [vmem:[#allocation2 + $0x78] sm:$0xff]
  %v352 = vld [vmem:[#allocation2 + $0x80] sm:$0xff]
  %v353 = vld [vmem:[#allocation2 + $0x88] sm:$0xff]
  %v354 = vld [vmem:[#allocation2 + $0x90] sm:$0xff]
  %v355 = vld [vmem:[#allocation2 + $0x98] sm:$0xff]
  %v356 = vld [vmem:[#allocation2 + $0xa0] sm:$0xff]
  %v357 = vld [vmem:[#allocation2 + $0xa8] sm:$0xff]
  %v358 = vld [vmem:[#allocation2 + $0xb0] sm:$0xff]
  %v359 = vld [vmem:[#allocation2 + $0xb8] sm:$0xff]
  %v360 = vld [vmem:[#allocation2 + $0xc0] sm:$0xff]
  %v361 = vld [vmem:[#allocation2 + $0xc8] sm:$0xff]
  %v362 = vld [vmem:[#allocation2 + $0xd0] sm:$0xff]
  %v363 = vld [vmem:[#allocation2 + $0xd8] sm:$0xff]
  %v364 = vld [vmem:[#allocation2 + $0xe0] sm:$0xff]
  %v365 = vld [vmem:[#allocation2 + $0xe8] sm:$0xff]
  %v366 = vld [vmem:[#allocation2 + $0xf0] sm:$0xff]
  %v367 = vld [vmem:[#allocation2 + $0xf8] sm:$0xff]
  %v368 = vld [vmem:[#allocation2 + $0x100] sm:$0xff]
  %v369 = vld [vmem:[#allocation2 + $0x108] sm:$0xff]
  %v370 = vld [vmem:[#allocation2 + $0x110] sm:$0xff]
  %v371 = vld [vmem:[#allocation2 + $0x118] sm:$0xff]
  %vm372 = vcmask 588800
  %v374 = vsel %vm372, %v335, 0
  %376 = vmatprep.subr.mxu0 0.0
  %377 = vmatpush1.msra.mxu0 0.0
  %378 = vmatprep.subr.mxu0 0.0
  %379 = vmatpush1.msra.mxu0 0.0
  %380 = vmatprep.subr.mxu0 0.0
  %381 = vmatpush1.msra.mxu0 0.0
  %382 = vmatprep.subr.mxu0 0.0
  %383 = vmatpush1.msra.mxu0 0.0
  %384 = vmatprep.subr.mxu0 0.0
  %385 = vmatpush1.msra.mxu0 0.0
  %386 = vmatprep.subr.mxu0 0.0
  %387 = vmatpush1.msra.mxu0 0.0
  %388 = vmatprep.subr.mxu0 0.0
  %389 = vmatpush1.msra.mxu0 0.0
  %390 = vmatprep.subr.mxu0 %v369
  %391 = vmatpush1.msra.mxu0 %v368
  %392 = vmatprep.subr.mxu0 %v365
  %393 = vmatpush1.msra.mxu0 %v364
  %394 = vmatprep.subr.mxu0 %v361
  %395 = vmatpush1.msra.mxu0 %v360
  %396 = vmatprep.subr.mxu0 %v357
  %397 = vmatpush1.msra.mxu0 %v356
  %398 = vmatprep.subr.mxu0 %v353
  %399 = vmatpush1.msra.mxu0 %v352
  %400 = vmatprep.subr.mxu0 %v349
  %401 = vmatpush1.msra.mxu0 %v348
  %402 = vmatprep.subr.mxu0 %v345
  %403 = vmatpush1.msra.mxu0 %v344
  %404 = vmatprep.subr.mxu0 %v341
  %405 = vmatpush1.msra.mxu0 %v340
  %406 = vmatprep.subr.mxu0 %v337
  %407 = vmatpush1.msra.mxu0 %v336
  %408 = vmatprep.subr.mxu0 0.0
  %409 = vmatpush2.msra.mxu0 0.0
  %410 = vmatprep.subr.mxu0 0.0
  %411 = vmatpush2.msra.mxu0 0.0
  %412 = vmatprep.subr.mxu0 0.0
  %413 = vmatpush2.msra.mxu0 0.0
  %414 = vmatprep.subr.mxu0 0.0
  %415 = vmatpush2.msra.mxu0 0.0
  %416 = vmatprep.subr.mxu0 0.0
  %417 = vmatpush2.msra.mxu0 0.0
  %418 = vmatprep.subr.mxu0 0.0
  %419 = vmatpush2.msra.mxu0 0.0
  %420 = vmatprep.subr.mxu0 0.0
  %421 = vmatpush2.msra.mxu0 0.0
  %422 = vmatprep.subr.mxu0 0.0
  %423 = vmatpush2.msra.mxu0 0.0
  %424 = vmatprep.subr.mxu0 0.0
  %425 = vmatpush2.msra.mxu0 0.0
  %426 = vmatprep.subr.mxu0 0.0
  %427 = vmatpush2.msra.mxu0 0.0
  %428 = vmatprep.subr.mxu0 0.0
  %429 = vmatpush2.msra.mxu0 0.0
  %430 = vmatprep.subr.mxu0 0.0
  %431 = vmatpush2.msra.mxu0 0.0
  %432 = vmatprep.subr.mxu0 0.0
  %433 = vmatpush2.msra.mxu0 0.0
  %434 = vmatprep.subr.mxu0 0.0
  %435 = vmatpush2.msra.mxu0 0.0
  %436 = vmatprep.subr.mxu0 0.0
  %437 = vmatpush2.msra.mxu0 0.0
  %438 = vmatprep.subr.mxu0 0.0
  %439 = vmatpush2.msra.mxu0 0.0
  %440 = vmatprep.mubr.f32.mxu0 0.0
  %441 = vmatmul.mubr.f32.gmra.mxu0 %v374
  %v442 = vpop.f32.mrf.mxu0
  %v443 = vadd.f32 0.0, %v442
  %v444 = vpop.f32.mrf.mxu0
  %v445 = vadd.f32 0.0, %v444
  %446 = vdwg.mxu0
  %447 = vmatprep.subr.mxu0 0.0
  %448 = vmatpush1.msra.mxu0 0.0
  %449 = vmatprep.subr.mxu0 0.0
  %450 = vmatpush1.msra.mxu0 0.0
  %451 = vmatprep.subr.mxu0 0.0
  %452 = vmatpush1.msra.mxu0 0.0
  %453 = vmatprep.subr.mxu0 0.0
  %454 = vmatpush1.msra.mxu0 0.0
  %455 = vmatprep.subr.mxu0 0.0
  %456 = vmatpush1.msra.mxu0 0.0
  %457 = vmatprep.subr.mxu0 0.0
  %458 = vmatpush1.msra.mxu0 0.0
  %459 = vmatprep.subr.mxu0 0.0
  %460 = vmatpush1.msra.mxu0 0.0
  %461 = vmatprep.subr.mxu0 %v371
  %462 = vmatpush1.msra.mxu0 %v370
  %463 = vmatprep.subr.mxu0 %v367
  %464 = vmatpush1.msra.mxu0 %v366
  %465 = vmatprep.subr.mxu0 %v363
  %466 = vmatpush1.msra.mxu0 %v362
  %467 = vmatprep.subr.mxu0 %v359
  %468 = vmatpush1.msra.mxu0 %v358
  %469 = vmatprep.subr.mxu0 %v355
  %470 = vmatpush1.msra.mxu0 %v354
  %471 = vmatprep.subr.mxu0 %v351
  %472 = vmatpush1.msra.mxu0 %v350
  %473 = vmatprep.subr.mxu0 %v347
  %474 = vmatpush1.msra.mxu0 %v346
  %475 = vmatprep.subr.mxu0 %v343
  %476 = vmatpush1.msra.mxu0 %v342
  %477 = vmatprep.subr.mxu0 %v339
  %478 = vmatpush1.msra.mxu0 %v338
  %479 = vmatprep.subr.mxu0 0.0
  %480 = vmatpush2.msra.mxu0 0.0
  %481 = vmatprep.subr.mxu0 0.0
  %482 = vmatpush2.msra.mxu0 0.0
  %483 = vmatprep.subr.mxu0 0.0
  %484 = vmatpush2.msra.mxu0 0.0
  %485 = vmatprep.subr.mxu0 0.0
  %486 = vmatpush2.msra.mxu0 0.0
  %487 = vmatprep.subr.mxu0 0.0
  %488 = vmatpush2.msra.mxu0 0.0
  %489 = vmatprep.subr.mxu0 0.0
  %490 = vmatpush2.msra.mxu0 0.0
  %491 = vmatprep.subr.mxu0 0.0
  %492 = vmatpush2.msra.mxu0 0.0
  %493 = vmatprep.subr.mxu0 0.0
  %494 = vmatpush2.msra.mxu0 0.0
  %495 = vmatprep.subr.mxu0 0.0
  %496 = vmatpush2.msra.mxu0 0.0
  %497 = vmatprep.subr.mxu0 0.0
  %498 = vmatpush2.msra.mxu0 0.0
  %499 = vmatprep.subr.mxu0 0.0
  %500 = vmatpush2.msra.mxu0 0.0
  %501 = vmatprep.subr.mxu0 0.0
  %502 = vmatpush2.msra.mxu0 0.0
  %503 = vmatprep.subr.mxu0 0.0
  %504 = vmatpush2.msra.mxu0 0.0
  %505 = vmatprep.subr.mxu0 0.0
  %506 = vmatpush2.msra.mxu0 0.0
  %507 = vmatprep.subr.mxu0 0.0
  %508 = vmatpush2.msra.mxu0 0.0
  %509 = vmatprep.subr.mxu0 0.0
  %510 = vmatpush2.msra.mxu0 0.0
  %511 = vmatprep.mubr.f32.mxu0 0.0
  %512 = vmatmul.mubr.f32.gmra.mxu0 %v374
  %v513 = vpop.f32.mrf.mxu0
  %v514 = vadd.f32 0.0, %v513
  %v515 = vpop.f32.mrf.mxu0
  %v516 = vadd.f32 0.0, %v515
  %517 = vdwg.mxu0
  %v518 = vadd.f32 %v443, %v445
  %v519 = vadd.f32 %v518, %v514
  %v520 = vadd.f32 %v519, %v516
  %521 = vadd.xlane.f32.xlu0 %v520
  %v522 = vpop.xlane.xlu0 %521
  %v523 = vmul.f32 %v443, %v443
  %v524 = vmul.f32 %v445, %v445
  %v525 = vmul.f32 %v514, %v514
  %v526 = vmul.f32 %v516, %v516
  %v527 = vadd.f32 %v523, %v524
  %v528 = vadd.f32 %v527, %v525
  %v529 = vadd.f32 %v528, %v526
  %530 = vadd.xlane.f32.xlu0 %v529
  %v531 = vpop.xlane.xlu0 %530
  %v532 = vmul.f32 %v522, 0.001953125
  %v533 = vmul.f32 %v531, 0.001953125
  %v534 = vmul.f32 %v532, %v532
  %v535 = vsub.f32 %v533, %v534
  %v536 = vadd.f32 %v535, 1e-05
  %v537 = vrsqrt.pop %v536
  %v538 = vld [vmem:[%s2] sm:$0xff]
  %v539 = vmul.f32 %v538, %v537
  %v540 = vmul.f32 %v532, %v539
  %542 = vrot.lane.b32.xlu0 %v540, 1
  %v543 = vpop.permute.xlu0 %542
  %v545 = vsub.f32 %v538, %v543
  %547 = vset.pattern.permute.xlu0 0
  %548 = vperm.xlu0 %547, %v539
  %v549 = vpop.permute.xlu0 %548
  %v551 = vmul.f32 %v443, %v549
  %v552 = vmul.f32 %v445, %v549
  %554 = vset.pattern.permute.xlu0 1
  %555 = vperm.xlu0 %554, %v545
  %v556 = vpop.permute.xlu0 %555
  %v558 = vadd.f32 %v551, %v556
  %v559 = vadd.f32 %v552, %v556
  %560 = vst [vmem:[%s3] sm:$0xff] %v558
  %561 = vst [vmem:[%s3 + $0x8] sm:$0xff] %v559
  %v562 = vmul.f32 %v514, %v549
  %v563 = vmul.f32 %v516, %v549
  %v564 = vadd.f32 %v562, %v556
  %v565 = vadd.f32 %v563, %v556
  %s566 = scalar_lea.vmem %s3, 16
  %567 = vst [vmem:[%s566] sm:$0xff] %v564
  %568 = vst [vmem:[%s566 + $0x8] sm:$0xff] %v565
  // Predicated region
  $region14: #{conv_bn_2d.1} parent=0 // pred_check
    _
  $region15: #{conv_bn_2d.1} parent=0 // pred_check_branch
    %570 = sbr.rel (0) target = $region17
  $region16: #{conv_bn_2d.1} parent=0 // pred_region
    _
  $region17: #{conv_bn_2d.1} parent=0 // pred_fallthru
    _
  // Predicated region
  $region18: #{conv_bn_2d.1} parent=0 // pred_check
    _
  $region19: #{conv_bn_2d.1} parent=0 // pred_check_branch
    %572 = sbr.rel (0) target = $region21
  $region20: #{conv_bn_2d.1} parent=0 // pred_region
    _
  $region21: #{conv_bn_2d.1} parent=0 // pred_fallthru
    _

</llo_original>
